<compile_context>
chip_gen: v5e
topology: v5e:2x2
jax: 0.10.0
libtpu: 0.0.40
codegen_flags: <defaults>
</compile_context>

<pallas_src>
import math
from functools import partial

import jax
import jax.numpy as jnp
from jax import lax
from jax.experimental import pallas as pl
from jax.experimental.pallas import tpu as pltpu

_NSEM = 8  # round-robin DMA-semaphore slots (number of outstanding copies)


def _vmem_limit_bytes(num_row_blocks, rows, dim, itemsize):
    """Explicit scoped-VMEM budget: the (rows, dim) blocks + headroom."""
    need = num_row_blocks * rows * dim * itemsize + (2 << 20)
    return int(min(max(need, 4 << 20), 64 << 20))


# ---------------------------------------------------------------------------
# get(ind, time, interp=False): gather memory[flat[b], :] -> (B, dim)
# ---------------------------------------------------------------------------
def _get_kernel(flat_ref, mem_hbm, out_ref, sems):
    B = out_ref.shape[0]

    # Issue all B row gathers (HBM -> output VMEM block) before waiting on any
    # so the DMAs overlap; semaphores are reused round-robin. Loops are fully
    # unrolled (static Python range) so descriptor issue packs tightly.
    for b in range(B):
        pltpu.make_async_copy(
            mem_hbm.at[pl.ds(flat_ref[b], 1)],
            out_ref.at[pl.ds(b, 1)],
            sems.at[b % _NSEM],
        ).start()

    for b in range(B):
        # Static src slice: only the dst size / semaphore matter for .wait(),
        # and it avoids extra SMEM reads interleaved with waits.
        pltpu.make_async_copy(
            mem_hbm.at[pl.ds(0, 1)],
            out_ref.at[pl.ds(b, 1)],
            sems.at[b % _NSEM],
        ).wait()


@partial(jax.jit, static_argnames=("duration",))
def memory_get(memory_flat, ind, time, duration):
    """Equivalent of Memory.get(ind, time, interp=False); returns (B, dim)."""
    B = ind.shape[0]
    _, dim = memory_flat.shape
    flat = (ind.astype(jnp.int32) * duration + time.astype(jnp.int32)).reshape(-1)
    return pl.pallas_call(
        _get_kernel,
        out_shape=jax.ShapeDtypeStruct((B, dim), memory_flat.dtype),
        grid_spec=pltpu.PrefetchScalarGridSpec(
            num_scalar_prefetch=1,
            grid=(1,),
            in_specs=[pl.BlockSpec(memory_space=pl.ANY)],        # bank stays in HBM
            out_specs=pl.BlockSpec((B, dim), lambda i, flat_ref: (0, 0)),
            scratch_shapes=[pltpu.SemaphoreType.DMA((_NSEM,))],
        ),
        compiler_params=pltpu.CompilerParams(
            dimension_semantics=("arbitrary",),
            vmem_limit_bytes=_vmem_limit_bytes(2, B, dim, memory_flat.dtype.itemsize),
        ),
    )(flat, memory_flat)


# ---------------------------------------------------------------------------
# update(mem, momentum, ind, time, interp=False):
#   old        = memory[flat[b], :]                       (gather)
#   upd        = mem * momentum + old * (1 - momentum)
#   upd        = upd * rsqrt(sum(upd^2, -1) + eps)        (L2 normalize, dim=2)
#   memory[flat[b], :] = upd                              (scatter)
# Also returns the gathered `old` rows (fused get()).
# ---------------------------------------------------------------------------
def _make_update_kernel(momentum, eps=1e-12):
    momentum = float(momentum)
    one_minus = 1.0 - momentum  # hoisted compile-time constant

    def kernel(flat_ref, mem_new_ref, mem_in_hbm,     # inputs
               mem_out_hbm, old_out_ref,              # outputs
               sems):                                 # scratch
        B = old_out_ref.shape[0]

        # 1) Gather all B old rows straight into the fused-get output block.
        #    Every gather completes before any scatter below, so "old" is
        #    always the pre-update memory.
        for b in range(B):
            pltpu.make_async_copy(
                mem_in_hbm.at[pl.ds(flat_ref[b], 1)],
                old_out_ref.at[pl.ds(b, 1)],
                sems.at[b % _NSEM],
            ).start()
        for b in range(B):
            pltpu.make_async_copy(
                mem_in_hbm.at[pl.ds(0, 1)],
                old_out_ref.at[pl.ds(b, 1)],
                sems.at[b % _NSEM],
            ).wait()

        # 2) Momentum mix + L2 normalize: one vectorized (B, dim) pass.
        #    Written in place into mem_new's private VMEM block, which then
        #    doubles as the scatter source (no VMEM scratch buffers).
        old = old_out_ref[...]
        upd = mem_new_ref[...] * momentum + old * one_minus
        ssq = jnp.sum(upd * upd, axis=-1, keepdims=True)
        mem_new_ref[...] = upd * lax.rsqrt(ssq + eps)

        # 3) Scatter normalized rows back into the (aliased) HBM bank.
        for b in range(B):
            pltpu.make_async_copy(
                mem_new_ref.at[pl.ds(b, 1)],
                mem_out_hbm.at[pl.ds(flat_ref[b], 1)],
                sems.at[b % _NSEM],
            ).start()
        for b in range(B):
            pltpu.make_async_copy(
                mem_new_ref.at[pl.ds(b, 1)],
                mem_out_hbm.at[pl.ds(0, 1)],
                sems.at[b % _NSEM],
            ).wait()

    return kernel


@partial(jax.jit, static_argnames=("momentum", "duration"),
         donate_argnames=("memory_flat",))
def memory_update(memory_flat, mem_new, ind, time, momentum, duration):
    """Equivalent of Memory.update(mem, momentum, ind, time, interp=False).

    Returns (new_bank, old_rows). The bank is donated + aliased through the
    pallas call, so only the B touched rows are DMA'd; untouched rows never move.
    """
    B, dim = mem_new.shape
    flat = (ind.astype(jnp.int32) * duration + time.astype(jnp.int32)).reshape(-1)
    kernel = _make_update_kernel(momentum)
    new_bank, old_rows = pl.pallas_call(
        kernel,
        out_shape=(
            jax.ShapeDtypeStruct(memory_flat.shape, memory_flat.dtype),
            jax.ShapeDtypeStruct((B, dim), memory_flat.dtype),
        ),
        grid_spec=pltpu.PrefetchScalarGridSpec(
            num_scalar_prefetch=1,
            grid=(1,),
            in_specs=[
                pl.BlockSpec((B, dim), lambda i, flat_ref: (0, 0)),  # new embeddings
                pl.BlockSpec(memory_space=pl.ANY),                   # bank stays in HBM
            ],
            out_specs=(
                pl.BlockSpec(memory_space=pl.ANY),                   # updated bank (aliased)
                pl.BlockSpec((B, dim), lambda i, flat_ref: (0, 0)),  # fused get() rows
            ),
            scratch_shapes=[pltpu.SemaphoreType.DMA((_NSEM,))],
        ),
        # operands: (flat, mem_new, memory_flat) -> bank aliases output 0.
        # (alias indices count the scalar-prefetch operand, same as the
        #  upstream ragged-paged-attention kernel.)
        input_output_aliases={2: 0},
        compiler_params=pltpu.CompilerParams(
            dimension_semantics=("arbitrary",),
            vmem_limit_bytes=_vmem_limit_bytes(4, B, dim, memory_flat.dtype.itemsize),
        ),
    )(flat, mem_new, memory_flat)
    return new_bank, old_rows


# ---------------------------------------------------------------------------
# Thin module-like wrapper (parameter setup / glue in plain JAX)
# ---------------------------------------------------------------------------
class Memory:
    def __init__(self, length, duration, dim, key):
        self.length = length
        self.duration = duration
        self.dim = dim
        stdv = 1.0 / math.sqrt(dim / 3)
        # torch.rand(...).mul_(2*stdv).add_(-stdv)  ==  U(-stdv, stdv)
        mem = jax.random.uniform(key, (length, duration, dim), jnp.float32) * (2.0 * stdv) - stdv
        # Bank layout: (length*duration, dim); lane axis dense, no singleton middle dim.
        self.memory_flat = mem.reshape(length * duration, dim)

    @property
    def memory(self):
        return self.memory_flat.reshape(self.length, self.duration, self.dim)

    def get(self, ind, time):
        B = ind.shape[0]
        rows = memory_get(self.memory_flat, ind, time, duration=self.duration)
        return rows.reshape(B, 1, self.dim)

    def update(self, mem, momentum, ind, time):
        B = ind.shape[0]
        mem2 = mem.reshape(B, self.dim)
        new_bank, old_rows = memory_update(
            self.memory_flat, mem2, ind, time,
            momentum=float(momentum), duration=self.duration,
        )
        self.memory_flat = new_bank
        # PyTorch update() returns None; the fused kernel additionally yields
        # the pre-update rows (== get(ind, time)) so callers doing
        # get -> loss -> update can skip a second gather kernel.
        return old_rows.reshape(B, 1, self.dim)

    def forward(self, inputs):
        # PyTorch Memory.forward is `pass` (no-op).
        return None


if __name__ == "__main__":
    length, duration, dim = 8, 4, 128
    B = 2

    key = jax.random.PRNGKey(0)
    k_mem, k_x = jax.random.split(key)

    bank = Memory(length, duration, dim, k_mem)
    memory_before = bank.memory  # independent copy for the reference check

    x = jax.random.normal(k_x, (B, dim), jnp.float32)          # new embeddings
    ind = jnp.array([3, 5], dtype=jnp.int32)                    # sample indices
    time = jnp.array([1, 2], dtype=jnp.int32)                   # time indices
    momentum = 0.5

    got = bank.get(ind, time)                                   # (B, 1, dim)
    old_rows = bank.update(x, momentum, ind, time)              # fused get() output
    new_memory = bank.memory
    jax.block_until_ready((got, old_rows, new_memory))

    # --- pure-JAX reference (mirrors the PyTorch semantics) ---
    ref_got = memory_before[ind, time][:, None, :]
    upd = x[:, None, :] * momentum + ref_got * (1.0 - momentum)
    upd = upd / jnp.sqrt(jnp.sum(upd * upd, axis=2, keepdims=True))
    ref_memory = memory_before.at[ind, time].set(upd[:, 0, :])

    assert jnp.allclose(got, ref_got, atol=1e-6), "get() mismatch"
    assert jnp.allclose(old_rows, ref_got, atol=1e-6), "fused old-rows mismatch"
    assert jnp.allclose(new_memory, ref_memory, atol=1e-5), "update() mismatch"

    print("KERNEL_OK")
</pallas_src>

<mosaic_0001>
module attributes {stable_mosaic.version = 11 : i64} {
  func.func @_get_kernel(%arg0: i32, %arg1: memref<2xi32, #tpu.memory_space<smem>>, %arg2: memref<32x128xf32, #tpu.memory_space<any>>, %arg3: memref<2x128xf32, #tpu.memory_space<vmem>>, %arg4: memref<8x!tpu.dma_semaphore, #tpu.memory_space<semaphore_mem>>) attributes {dimension_semantics = [#tpu.dimension_semantics<arbitrary>], iteration_bounds = array<i64: 1>, scalar_prefetch = 1 : i64, scratch_operands = 1 : i64, tpu.core_type = #tpu.core_type<tc>, window_params = [{}, {pipeline_mode = #tpu.pipeline_mode<synchronous>, transform_indices = @transform_1, window_bounds = array<i64: 2, 128>}]} {
    %c0 = arith.constant 0 : index
    %0 = memref.load %arg1[%c0] : memref<2xi32, #tpu.memory_space<smem>>
    %c0_i32 = arith.constant 0 : i32
    %c0_i32_0 = arith.constant 0 : i32
    %1 = tpu.memref_slice %arg2[%0, %c0_i32_0] : memref<32x128xf32, #tpu.memory_space<any>> -> memref<1x128xf32, #tpu.memory_space<any>>
    %c0_i32_1 = arith.constant 0 : i32
    %c0_i32_2 = arith.constant 0 : i32
    %2 = tpu.memref_slice %arg3[%c0_i32_1, %c0_i32_2] : memref<2x128xf32, #tpu.memory_space<vmem>> -> memref<1x128xf32, #tpu.memory_space<vmem>>
    %3 = tpu.memref_slice %arg4[%c0_i32] : memref<8x!tpu.dma_semaphore, #tpu.memory_space<semaphore_mem>> -> memref<1x!tpu.dma_semaphore, #tpu.memory_space<semaphore_mem>>
    %4 = tpu.memref_squeeze %3 : memref<1x!tpu.dma_semaphore, #tpu.memory_space<semaphore_mem>> -> memref<!tpu.dma_semaphore, #tpu.memory_space<semaphore_mem>>
    tpu.enqueue_dma source(%1 : memref<1x128xf32, #tpu.memory_space<any>>) target(%2 : memref<1x128xf32, #tpu.memory_space<vmem>>) target_semaphore(%4 : memref<!tpu.dma_semaphore, #tpu.memory_space<semaphore_mem>>)
    %c1 = arith.constant 1 : index
    %5 = memref.load %arg1[%c1] : memref<2xi32, #tpu.memory_space<smem>>
    %c1_i32 = arith.constant 1 : i32
    %c0_i32_3 = arith.constant 0 : i32
    %6 = tpu.memref_slice %arg2[%5, %c0_i32_3] : memref<32x128xf32, #tpu.memory_space<any>> -> memref<1x128xf32, #tpu.memory_space<any>>
    %c1_i32_4 = arith.constant 1 : i32
    %c0_i32_5 = arith.constant 0 : i32
    %7 = tpu.memref_slice %arg3[%c1_i32_4, %c0_i32_5] : memref<2x128xf32, #tpu.memory_space<vmem>> -> memref<1x128xf32, #tpu.memory_space<vmem>>
    %8 = tpu.memref_slice %arg4[%c1_i32] : memref<8x!tpu.dma_semaphore, #tpu.memory_space<semaphore_mem>> -> memref<1x!tpu.dma_semaphore, #tpu.memory_space<semaphore_mem>>
    %9 = tpu.memref_squeeze %8 : memref<1x!tpu.dma_semaphore, #tpu.memory_space<semaphore_mem>> -> memref<!tpu.dma_semaphore, #tpu.memory_space<semaphore_mem>>
    tpu.enqueue_dma source(%6 : memref<1x128xf32, #tpu.memory_space<any>>) target(%7 : memref<1x128xf32, #tpu.memory_space<vmem>>) target_semaphore(%9 : memref<!tpu.dma_semaphore, #tpu.memory_space<semaphore_mem>>)
    %c0_i32_6 = arith.constant 0 : i32
    %c0_i32_7 = arith.constant 0 : i32
    %c0_i32_8 = arith.constant 0 : i32
    %10 = tpu.memref_slice %arg2[%c0_i32_7, %c0_i32_8] : memref<32x128xf32, #tpu.memory_space<any>> -> memref<1x128xf32, #tpu.memory_space<any>>
    %c0_i32_9 = arith.constant 0 : i32
    %c0_i32_10 = arith.constant 0 : i32
    %11 = tpu.memref_slice %arg3[%c0_i32_9, %c0_i32_10] : memref<2x128xf32, #tpu.memory_space<vmem>> -> memref<1x128xf32, #tpu.memory_space<vmem>>
    %12 = tpu.memref_slice %arg4[%c0_i32_6] : memref<8x!tpu.dma_semaphore, #tpu.memory_space<semaphore_mem>> -> memref<1x!tpu.dma_semaphore, #tpu.memory_space<semaphore_mem>>
    %13 = tpu.memref_squeeze %12 : memref<1x!tpu.dma_semaphore, #tpu.memory_space<semaphore_mem>> -> memref<!tpu.dma_semaphore, #tpu.memory_space<semaphore_mem>>
    tpu.wait_dma2 semaphore(%13 : memref<!tpu.dma_semaphore, #tpu.memory_space<semaphore_mem>>) src(%10 : memref<1x128xf32, #tpu.memory_space<any>>) dst(%11 : memref<1x128xf32, #tpu.memory_space<vmem>>)
    %c1_i32_11 = arith.constant 1 : i32
    %c0_i32_12 = arith.constant 0 : i32
    %c0_i32_13 = arith.constant 0 : i32
    %14 = tpu.memref_slice %arg2[%c0_i32_12, %c0_i32_13] : memref<32x128xf32, #tpu.memory_space<any>> -> memref<1x128xf32, #tpu.memory_space<any>>
    %c1_i32_14 = arith.constant 1 : i32
    %c0_i32_15 = arith.constant 0 : i32
    %15 = tpu.memref_slice %arg3[%c1_i32_14, %c0_i32_15] : memref<2x128xf32, #tpu.memory_space<vmem>> -> memref<1x128xf32, #tpu.memory_space<vmem>>
    %16 = tpu.memref_slice %arg4[%c1_i32_11] : memref<8x!tpu.dma_semaphore, #tpu.memory_space<semaphore_mem>> -> memref<1x!tpu.dma_semaphore, #tpu.memory_space<semaphore_mem>>
    %17 = tpu.memref_squeeze %16 : memref<1x!tpu.dma_semaphore, #tpu.memory_space<semaphore_mem>> -> memref<!tpu.dma_semaphore, #tpu.memory_space<semaphore_mem>>
    tpu.wait_dma2 semaphore(%17 : memref<!tpu.dma_semaphore, #tpu.memory_space<semaphore_mem>>) src(%14 : memref<1x128xf32, #tpu.memory_space<any>>) dst(%15 : memref<1x128xf32, #tpu.memory_space<vmem>>)
    return
  }
  func.func @transform_1(%arg0: i32, %arg1: memref<2xi32, #tpu.memory_space<smem>>) -> (i32, i32) {
    %c0_i32 = arith.constant 0 : i32
    %c0_i32_0 = arith.constant 0 : i32
    %c0_i32_1 = arith.constant 0 : i32
    return %c0_i32, %c0_i32_0 : i32, i32
  }
}

</mosaic_0001>

<llo_original>
// kernel: memory_get.1
$region0: #{memory_get.1}
  #allocation0 [shape = 'u32[]', space=smem, size = 0x4, offset = 0x4, fixed_abs, tag = 'smem constant byte address 0x4 - core index']
  #allocation1 [shape = 'u32[72,128]{1,0:T(1,128)}', space=vmem, size = 0x9000, scoped, tag = 'internal scratch']
  #allocation2 [shape = 's32[8]{0}', space=sflag, size = 0x20, scoped, tag = 'scratch operand']
  #allocation3 [shape = 's32[1]{0}', space=sflag, size = 0x4, scoped, tag = 'scoped memory for memory_get.1']
  #allocation4 [shape = 'u8[512]{0}', space=smem, size = 0x200, scoped, tag = 'prefetched SMEM operand 0']
  #allocation7 [shape = 's32[]', space=sflag, size = 0x4, offset = 0, fixed_abs, tag = 'sflag constant byte address 0x0 - dummy sync flag']
  #allocation8 [shape = 's32[]', space=sflag, size = 0x4, offset = 0, fixed_abs, tag = 'sflag constant byte address 0x0 - dummy sync flag']
  #allocation9 [shape = 'u32[]', space=smem, size = 0x4, offset = 0x44, fixed_abs, tag = 'smem constant byte address 0x44 - assertion arg 0']
  #allocation10 [shape = 'u32[]', space=smem, size = 0x4, offset = 0x48, fixed_abs, tag = 'smem constant byte address 0x48 - assertion arg 1']
  #allocation11 [shape = 's32[]', space=sflag, size = 0x4, offset = 0, fixed_abs, tag = 'sflag constant byte address 0x0 - dummy sync flag']
  #allocation12 [shape = 's32[]', space=sflag, size = 0x4, offset = 0, fixed_abs, tag = 'sflag constant byte address 0x0 - dummy sync flag']
  %s0 = inlined_call_operand.vmem [shape: s32[2], index: 0, kind: input, shape index: {}]
  %s1 = inlined_call_operand.hbm [shape: f32[32,128], index: 1, kind: input, shape index: {}]
  %s2 = inlined_call_operand.hbm [shape: f32[2,128], index: 2, kind: output, shape index: {}]
  %s3 = sld [smem:[#allocation0]]
  $region18: #{memory_get.1} parent=0
    _
  %s5 = ssub.s32 1, %s3
  %s6 = scalar_select 0, %s5, %s3
  %s8 = sshll.u32 %s0, 4
  %s9 = int_to_ptr.vmem [resolvable:$true] %s8
  %11 = dma.vmem_to_smem %s9, 16, [#allocation4], [#allocation3]
  %13 = dma.done [#allocation3], 16
  %14 = sfence
  $region1: #{memory_get.1} parent=0
    #allocation5 [shape = 'u8[1024]{0}', space=vmem, size = 0x400, scoped, tag = 'output window, operand 0, single buffered']
    #allocation6 [shape = 's32[1]{0}', space=sflag, size = 0x4, scoped, tag = 'scoped memory for memory_get.1']
    %15 = vsyncpa [#allocation6], 0
    %s16 = sld [smem:[#allocation4]]
    %s17 = scalar_lea.hbm %s1, %s16
    // Predicated region
    $region2: #{memory_get.1} parent=1 // pred_check
      _
    $region3: #{memory_get.1} parent=1 // pred_check_branch
      %19 = sbr.rel target = $region5
    $region4: #{memory_get.1} parent=1 // pred_region
      %20 = sst [smem:[#allocation9]] [#allocation8]
      %21 = sst [smem:[#allocation10]] [#allocation7]
    $region5: #{memory_get.1} parent=1 // pred_fallthru
      _
    %23 = shalt.err (0)
    %s25 = sshll.u32 %s17, 4
    %s26 = int_to_ptr.hbm [resolvable:$true] %s25
    %s27 = sshll.u32 [#allocation5], 4
    %s28 = int_to_ptr.vmem [resolvable:$true] %s27
    %30 = dma.hbm_to_vmem [thread:$0]  %s26, 16, %s28, [#allocation2]
    %s31 = sld [smem:[#allocation4 + $0x1]]
    %s32 = scalar_lea.hbm %s1, %s31
    %s33 = scalar_lea.vmem [#allocation5], 1
    %s34 = scalar_lea.sflag [#allocation2], 1
    // Predicated region
    $region6: #{memory_get.1} parent=1 // pred_check
      _
    $region7: #{memory_get.1} parent=1 // pred_check_branch
      %36 = sbr.rel target = $region9
    $region8: #{memory_get.1} parent=1 // pred_region
      %37 = sst [smem:[#allocation9]] [#allocation12]
      %38 = sst [smem:[#allocation10]] [#allocation11]
    $region9: #{memory_get.1} parent=1 // pred_fallthru
      _
    %40 = shalt.err (0)
    %s42 = sshll.u32 %s32, 4
    %s43 = int_to_ptr.hbm [resolvable:$true] %s42
    %s44 = sshll.u32 %s33, 4
    %s45 = int_to_ptr.vmem [resolvable:$true] %s44
    %47 = dma.hbm_to_vmem [thread:$0]  %s43, 16, %s45, %s34
    %s48 = smul.u32 1, 1
    %s49 = sshll.u32 %s48, 4
    %50 = dma.done [#allocation2], %s49
    %s51 = sshll.u32 %s48, 4
    %52 = dma.done %s34, %s51
    // Predicated region
    $region10: #{memory_get.1} parent=1 // pred_check
      _
    $region11: #{memory_get.1} parent=1 // pred_check_branch
      %54 = sbr.rel (0) target = $region13
    $region12: #{memory_get.1} parent=1 // pred_region
      %56 = vsyncadd [#allocation6], 0
      %s58 = sshll.u32 [#allocation5], 4
      %s59 = int_to_ptr.vmem [resolvable:$true] %s58
      %s60 = sshll.u32 %s2, 4
      %s61 = int_to_ptr.hbm [resolvable:$true] %s60
      %63 = dma.vmem_to_hbm [thread:$0]  %s59, 32, %s61, [#allocation6]
    $region13: #{memory_get.1} parent=1 // pred_fallthru
      _
    // Predicated region
    $region14: #{memory_get.1} parent=1 // pred_check
      _
    $region15: #{memory_get.1} parent=1 // pred_check_branch
      %65 = sbr.rel (0) target = $region17
    $region16: #{memory_get.1} parent=1 // pred_region
      %67 = dma.done [#allocation6], 32
    $region17: #{memory_get.1} parent=1 // pred_fallthru
      _
    %68 = vsyncpa [#allocation6], 1
  %69 = vsyncmov [#allocation2]
  %s70 = vpop.sfrf %69
  %p71 = scmp.eq.s32.totalorder %s70, 0
  %p72 = pneg %p71
  %74 = shalt.err (%p72)
  %s75 = scalar_lea.sflag [#allocation2], 1
  %76 = vsyncmov %s75
  %s77 = vpop.sfrf %76
  %p78 = scmp.eq.s32.totalorder %s77, 0
  %p79 = pneg %p78
  %81 = shalt.err (%p79)
  %s82 = scalar_lea.sflag [#allocation2], 2
  %83 = vsyncmov %s82
  %s84 = vpop.sfrf %83
  %p85 = scmp.eq.s32.totalorder %s84, 0
  %p86 = pneg %p85
  %88 = shalt.err (%p86)
  %s89 = scalar_lea.sflag [#allocation2], 3
  %90 = vsyncmov %s89
  %s91 = vpop.sfrf %90
  %p92 = scmp.eq.s32.totalorder %s91, 0
  %p93 = pneg %p92
  %95 = shalt.err (%p93)
  %s96 = scalar_lea.sflag [#allocation2], 4
  %97 = vsyncmov %s96
  %s98 = vpop.sfrf %97
  %p99 = scmp.eq.s32.totalorder %s98, 0
  %p100 = pneg %p99
  %102 = shalt.err (%p100)
  %s103 = scalar_lea.sflag [#allocation2], 5
  %104 = vsyncmov %s103
  %s105 = vpop.sfrf %104
  %p106 = scmp.eq.s32.totalorder %s105, 0
  %p107 = pneg %p106
  %109 = shalt.err (%p107)
  %s110 = scalar_lea.sflag [#allocation2], 6
  %111 = vsyncmov %s110
  %s112 = vpop.sfrf %111
  %p113 = scmp.eq.s32.totalorder %s112, 0
  %p114 = pneg %p113
  %116 = shalt.err (%p114)
  %s117 = scalar_lea.sflag [#allocation2], 7
  %118 = vsyncmov %s117
  %s119 = vpop.sfrf %118
  %p120 = scmp.eq.s32.totalorder %s119, 0
  %p121 = pneg %p120
  %123 = shalt.err (%p121)

</llo_original>
